<compile_context>
chip_gen: v6e
topology: v6e:2x2x1
jax: 0.10.0
libtpu: 0.0.40
codegen_flags: <defaults>
</compile_context>

<pallas_src>
import math

import jax
import jax.numpy as jnp
from jax.experimental import pallas as pl
from jax.experimental.pallas import tpu as pltpu

_LANE = 128


def _round_up(a, b):
    return ((a + b - 1) // b) * b


def _round_down(a, b):
    return (a // b) * b


def _pick_target_block_bytes():
    """2 MiB default (safe for v5e's 16 MiB scoped VMEM), 4 MiB on v6e/v7x."""
    try:
        kind = jax.devices()[0].device_kind.lower()
    except Exception:
        return 2 << 20
    if ("v6" in kind) or ("v7" in kind) or ("tpu7" in kind) or ("7x" in kind):
        return 4 << 20
    return 2 << 20


def _choose_tiles(B, F, itemsize, target_bytes):
    """Pick (bt, tf) block dims for the (B, F) view.

    bt: multiple of 8 (or == B when B < 8); tf: multiple of 128 (or == F).
    Block size ~ target_bytes so per-grid-step overhead stays hidden.
    """
    f_vmem = _round_up(max(F, 1), _LANE)                  # lane-padded row width
    per_sample_vmem = f_vmem * itemsize + _LANE * 4       # + f32 scale row (lane-padded)
    if B < 8:
        bt = B
    else:
        cap = max(1, target_bytes // per_sample_vmem)
        bt = max(8, min(_round_down(B, 8), max(8, _round_down(cap, 8))))
    budget_elems = max(_LANE, target_bytes // (bt * itemsize))
    if F <= budget_elems:
        tf = F
    else:
        tf = max(_LANE, _round_down(budget_elems, _LANE))
    return bt, tf


def _drop_path_kernel(scale_ref, x_ref, o_ref):
    # scale_ref: (bt, 1) float32 per-sample scale = keep_mask / keep_prob
    # x_ref / o_ref: (bt, tf) tiles of the flattened activation
    x = x_ref[...].astype(jnp.float32)         # free upcast; VPU has slack (HBM-bound)
    o_ref[...] = (x * scale_ref[...]).astype(o_ref.dtype)


def drop_path(x, drop_prob: float = 0.0, training: bool = False, *,
              key=None, donate_x: bool = False):
    """Per-sample stochastic depth, matching PyTorch drop_path forward semantics."""
    if drop_prob == 0.0 or not training:
        return x
    if not (0.0 <= drop_prob < 1.0):
        raise ValueError(f"drop_prob must be in [0, 1), got {drop_prob}")
    if key is None:
        raise ValueError("drop_path needs a PRNG key when training with drop_prob > 0")
    if not jnp.issubdtype(x.dtype, jnp.floating):
        raise TypeError(f"drop_path expects a floating dtype, got {x.dtype}")

    keep_prob = 1.0 - drop_prob
    orig_shape = x.shape
    B = x.shape[0]
    F = math.prod(x.shape[1:]) if x.ndim > 1 else 1

    # Per-sample keep mask pre-combined with 1/keep_prob (float32, tiny).
    u = jax.random.uniform(key, (B,), dtype=jnp.float32)
    scale = (jnp.floor(keep_prob + u) * jnp.float32(1.0 / keep_prob)).reshape(B, 1)

    itemsize = jnp.dtype(x.dtype).itemsize
    target_bytes = _pick_target_block_bytes()
    bt, tf = _choose_tiles(B, F, itemsize, target_bytes)

    x2 = x.reshape(B, F)                       # contiguous merge: no HBM copy
    grid = (pl.cdiv(B, bt), pl.cdiv(F, tf))    # ragged edges handled by block masking

    out2 = pl.pallas_call(
        _drop_path_kernel,
        out_shape=jax.ShapeDtypeStruct((B, F), x.dtype),
        grid=grid,
        in_specs=[
            pl.BlockSpec((bt, 1), lambda bi, fi: (bi, 0)),    # per-sample scale
            pl.BlockSpec((bt, tf), lambda bi, fi: (bi, fi)),  # x tile
        ],
        out_specs=pl.BlockSpec((bt, tf), lambda bi, fi: (bi, fi)),
        compiler_params=pltpu.CompilerParams(
            dimension_semantics=("parallel", "parallel")),
        input_output_aliases=({1: 0} if donate_x else {}),
    )(scale, x2)

    return out2.reshape(orig_shape)            # contiguous split: no HBM copy


class DropPath:
    """Drop paths (Stochastic Depth) per sample, applied in the main path of residual blocks."""

    def __init__(self, drop_prob=None):
        self.drop_prob = drop_prob
        self.training = True

    def __call__(self, x, *, key=None):
        p = self.drop_prob if self.drop_prob is not None else 0.0
        return drop_path(x, p, self.training, key=key)


if __name__ == "__main__":
    key = jax.random.PRNGKey(0)
    kx, kmask = jax.random.split(key)

    def ref_drop_path(xv, drop_prob, rng_key):
        keep_prob = 1.0 - drop_prob
        u = jax.random.uniform(rng_key, (xv.shape[0],), dtype=jnp.float32)
        mask = jnp.floor(keep_prob + u).reshape((xv.shape[0],) + (1,) * (xv.ndim - 1))
        return (xv.astype(jnp.float32) / keep_prob * mask).astype(xv.dtype)

    B, N, D = 2, 8, 32
    x = jax.random.normal(kx, (B, N, D), dtype=jnp.float32)

    module = DropPath(drop_prob=0.3)
    module.training = True
    out = jax.block_until_ready(module(x, key=kmask))
    ref = ref_drop_path(x, 0.3, kmask)
    assert out.shape == x.shape and out.dtype == x.dtype
    assert jnp.allclose(out, ref, atol=1e-6, rtol=1e-6)

    # bf16 input: scale stays float32, multiply in f32 inside the kernel.
    xb = x.astype(jnp.bfloat16)
    outb = jax.block_until_ready(module(xb, key=kmask))
    refb = ref_drop_path(xb, 0.3, kmask)
    assert outb.shape == xb.shape and outb.dtype == xb.dtype
    assert jnp.allclose(outb.astype(jnp.float32), refb.astype(jnp.float32),
                        atol=5e-2, rtol=5e-2)

    # Ragged feature size (F = 455, not a multiple of 128): no host padding,
    # Pallas masks the partial lane block.
    xr = jax.random.normal(kx, (3, 7, 65), dtype=jnp.float32)
    outr = jax.block_until_ready(drop_path(xr, 0.25, True, key=kmask))
    refr = ref_drop_path(xr, 0.25, kmask)
    assert outr.shape == xr.shape
    assert jnp.allclose(outr, refr, atol=1e-6, rtol=1e-6)

    # Eval-mode path: identity (no kernel launch, matches PyTorch semantics).
    module.training = False
    out_eval = jax.block_until_ready(module(x, key=kmask))
    assert jnp.allclose(out_eval, x)

    print("KERNEL_OK")
</pallas_src>

<mosaic_0001>
module attributes {stable_mosaic.version = 11 : i64} {
  func.func @_drop_path_kernel(%arg0: i32, %arg1: i32, %arg2: memref<2x1xf32, #tpu.memory_space<vmem>>, %arg3: memref<2x256xf32, #tpu.memory_space<vmem>>, %arg4: memref<2x256xf32, #tpu.memory_space<vmem>>) attributes {dimension_semantics = [#tpu.dimension_semantics<parallel>, #tpu.dimension_semantics<parallel>], iteration_bounds = array<i64: 1, 1>, scalar_prefetch = 0 : i64, scratch_operands = 0 : i64, tpu.core_type = #tpu.core_type<tc>, window_params = [{transform_indices = @transform_0, window_bounds = array<i64: 2, 1>}, {transform_indices = @transform_1, window_bounds = array<i64: 2, 256>}, {transform_indices = @transform_2, window_bounds = array<i64: 2, 256>}]} {
    %c0 = arith.constant 0 : index
    %c0_0 = arith.constant 0 : index
    %0 = vector.load %arg3[%c0, %c0_0] : memref<2x256xf32, #tpu.memory_space<vmem>>, vector<2x256xf32>
    %c0_1 = arith.constant 0 : index
    %c0_2 = arith.constant 0 : index
    %1 = vector.load %arg2[%c0_1, %c0_2] : memref<2x1xf32, #tpu.memory_space<vmem>>, vector<2x1xf32>
    %2 = vector.broadcast %1 : vector<2x1xf32> to vector<2x256xf32>
    %3 = arith.mulf %0, %2 : vector<2x256xf32>
    %c0_3 = arith.constant 0 : index
    %c0_4 = arith.constant 0 : index
    %4 = vector.load %arg4[%c0_3, %c0_4] : memref<2x256xf32, #tpu.memory_space<vmem>>, vector<2x256xf32>
    tpu.vector_store %arg4[%c0_3, %c0_4], %3 {strides = array<i32>} : memref<2x256xf32, #tpu.memory_space<vmem>>, vector<2x256xf32>,
    return
  }
  func.func @transform_0(%arg0: i32, %arg1: i32) -> (i32, i32) {
    %c0_i32 = arith.constant 0 : i32
    %c0_i32_0 = arith.constant 0 : i32
    return %arg0, %c0_i32 : i32, i32
  }
  func.func @transform_1(%arg0: i32, %arg1: i32) -> (i32, i32) {
    %c0_i32 = arith.constant 0 : i32
    return %arg0, %arg1 : i32, i32
  }
  func.func @transform_2(%arg0: i32, %arg1: i32) -> (i32, i32) {
    %c0_i32 = arith.constant 0 : i32
    return %arg0, %arg1 : i32, i32
  }
}

</mosaic_0001>

<llo_original>
// kernel: tpu_custom_call.1
$region0: #{tpu_custom_call.1}
  #allocation0 [shape = 'u32[]', space=smem, size = 0x4, offset = 0x4, fixed_abs, tag = 'smem constant byte address 0x4 - core index']
  #allocation1 [shape = 'u32[144,128]{1,0:T(1,128)}', space=vmem, size = 0x12000, scoped, tag = 'internal scratch']
  %s0 = inlined_call_operand.vmem [shape: f32[2,1], index: 0, kind: input, shape index: {}]
  %s1 = inlined_call_operand.vmem [shape: f32[2,256], index: 1, kind: input, shape index: {}]
  %s2 = inlined_call_operand.hbm [shape: f32[2,256], index: 2, kind: output, shape index: {}]
  %s3 = sld [smem:[#allocation0]]
  $region18: #{tpu_custom_call.1} parent=0
    _
  %s5 = ssub.s32 1, %s3
  %s6 = scalar_select 0, %s5, %s3
  $region1: #{tpu_custom_call.1} parent=0
    #allocation2 [shape = 'u8[2048]{0}', space=vmem, size = 0x800, scoped, tag = 'output window, operand 0, single buffered']
    #allocation3 [shape = 's32[1]{0}', space=sflag, size = 0x4, scoped, tag = 'scoped memory for tpu_custom_call.1']
    %7 = vsyncpa [#allocation3], 0
    // Predicated region
    $region2: #{tpu_custom_call.1} parent=1 // pred_check
      _
    $region3: #{tpu_custom_call.1} parent=1 // pred_check_branch
      %9 = sbr.rel (0) target = $region5
    $region4: #{tpu_custom_call.1} parent=1 // pred_region
      _
    $region5: #{tpu_custom_call.1} parent=1 // pred_fallthru
      _
    // Predicated region
    $region6: #{tpu_custom_call.1} parent=1 // pred_check
      _
    $region7: #{tpu_custom_call.1} parent=1 // pred_check_branch
      %11 = sbr.rel (0) target = $region9
    $region8: #{tpu_custom_call.1} parent=1 // pred_region
      _
    $region9: #{tpu_custom_call.1} parent=1 // pred_fallthru
      _
    %v12 = vld [vmem:[%s1] sm:$0xf]
    %v13 = vld [vmem:[%s0] sm:$0x3]
    %15 = vset.pattern.permute.xlu0 0
    %16 = vperm.xlu0 %15, %v13
    %v17 = vpop.permute.xlu0 %16
    %v19 = vunpack.c.l.s4 269488144
    %v20 = vunpack.c.0.s8 %v19
    %v21 = vlaneseq
    %v22 = vshrl.u32 %v21, 7
    %v23 = vsub.s32 %v20, %v22
    %v24 = vrot.slane %v17, %v23
    %v26 = vmul.f32 %v12, %v24
    %27 = vst [vmem:[#allocation2] sm:$0xf] %v26
    // Predicated region
    $region10: #{tpu_custom_call.1} parent=1 // pred_check
      _
    $region11: #{tpu_custom_call.1} parent=1 // pred_check_branch
      %29 = sbr.rel (0) target = $region13
    $region12: #{tpu_custom_call.1} parent=1 // pred_region
      %s31 = ssub.s32 64, 64
      %32 = vsyncadd [#allocation3], %s31
      %s34 = sshll.u32 [#allocation2], 4
      %s35 = int_to_ptr.vmem [resolvable:$true] %s34
      %37 = dma.vmem_to_hbm [thread:$0]  %s35, 64, %s2, [#allocation3]
    $region13: #{tpu_custom_call.1} parent=1 // pred_fallthru
      _
    // Predicated region
    $region14: #{tpu_custom_call.1} parent=1 // pred_check
      _
    $region15: #{tpu_custom_call.1} parent=1 // pred_check_branch
      %39 = sbr.rel (0) target = $region17
    $region16: #{tpu_custom_call.1} parent=1 // pred_region
      %40 = dma.done [#allocation3], 64
    $region17: #{tpu_custom_call.1} parent=1 // pred_fallthru
      _
    %41 = vsyncpa [#allocation3], 1

</llo_original>
